<compile_context>
chip_gen: v7x
topology: tpu7x:2x2x1
jax: 0.10.0
libtpu: 0.0.40
codegen_flags: <defaults>
</compile_context>

<pallas_src>
import functools

import jax
import jax.numpy as jnp
from jax.experimental import pallas as pl
from jax.experimental.pallas import tpu as pltpu


def _round_up(x, m):
    return (x + m - 1) // m * m


def _cdiv(a, b):
    return -(-a // b)


def _conv_bn_act_kernel(x_hbm, w_ref, scale_ref, bias_ref, o_ref, xbuf, dma_sem,
                        *, k, s, th_sub, tw, w_ph, h_pitch, n_rt, tn, act):
    """One grid step = one (image b, row-tile r) output block.

    x_hbm:     (N*H_pitch, W_reg, C1p)  bf16  padded NHWC activation, raw HBM ref
    w_ref:     (k*k, C1p, C2p)          bf16  conv weight, tap-major (resident)
    scale_ref: (1, C2p)                 f32   fused BN scale = gamma/sqrt(var+eps)
    bias_ref:  (1, C2p)                 f32   fused BN bias  = beta - mean*scale
    o_ref:     (1, TH, Wo_p, C2p)             output row tile
    xbuf:      (2, TH_in, W_reg, C1p)   bf16  double-buffered input row window
    dma_sem:   DMA semaphores (2,)
    """
    b = pl.program_id(0)
    r = pl.program_id(1)
    slot = r % 2

    th = o_ref.shape[1]
    wo_p = o_ref.shape[2]
    c2p = o_ref.shape[3]
    c1p = w_ref.shape[1]
    th_in = xbuf.shape[1]
    row_step = th * s

    def window_copy(row_tile, slot_):
        start = b * h_pitch + row_tile * row_step
        return pltpu.make_async_copy(
            x_hbm.at[pl.ds(start, th_in)], xbuf.at[slot_], dma_sem.at[slot_])

    # Cold start on the first row tile of each image.
    @pl.when(r == 0)
    def _():
        window_copy(r, slot).start()

    # Wait for the window we are about to compute on.
    window_copy(r, slot).wait()

    # Prefetch the next row tile (same image) into the other slot.
    if n_rt > 1:
        @pl.when(r + 1 < n_rt)
        def _():
            window_copy(r + 1, 1 - slot).start()

    n_hsub = th // th_sub
    n_wsub = wo_p // tw
    n_nsub = c2p // tn

    for hs in range(n_hsub):
        for ws in range(n_wsub):
            for ns in range(n_nsub):
                # Register-resident accumulator: (th_sub*tw, tn) f32 <= 128 KiB.
                acc = jnp.zeros((th_sub * tw, tn), dtype=jnp.float32)
                for dy in range(k):
                    for dx in range(k):
                        # Column base inside the phase-deinterleaved W axis.
                        c0 = (dx % s) * w_ph + dx // s + ws * tw
                        if th_sub == 1:
                            # One output row: unit-stride reads even for s > 1.
                            lhs = xbuf[slot, hs * s + dy, pl.ds(c0, tw), :]
                        else:
                            # th_sub > 1 is only used when s == 1.
                            lhs = xbuf[slot, pl.ds(hs * th_sub + dy, th_sub),
                                       pl.ds(c0, tw), :]
                            lhs = lhs.reshape(th_sub * tw, c1p)
                        acc = acc + jnp.dot(
                            lhs, w_ref[dy * k + dx, :, pl.ds(ns * tn, tn)],
                            preferred_element_type=jnp.float32)
                # Fused BatchNorm (eval) + LeakyReLU(0.1) in f32, single store.
                y = (acc * scale_ref[:, pl.ds(ns * tn, tn)]
                     + bias_ref[:, pl.ds(ns * tn, tn)])
                if act:
                    y = jnp.where(y > 0, y, 0.1 * y)
                y = y.astype(o_ref.dtype)
                if th_sub == 1:
                    o_ref[0, hs, pl.ds(ws * tw, tw), pl.ds(ns * tn, tn)] = y
                else:
                    o_ref[0, pl.ds(hs * th_sub, th_sub), pl.ds(ws * tw, tw),
                          pl.ds(ns * tn, tn)] = y.reshape(th_sub, tw, tn)


@functools.partial(jax.jit,
                   static_argnames=("k", "s", "act", "out_dtype", "tile_pixels"))
def conv_forward(x, weight, gamma, beta, running_mean, running_var, *,
                 k, s, act=True, eps=1e-5, out_dtype=jnp.bfloat16,
                 tile_pixels=1024):
    """Forward of YOLOv5 Conv: LeakyReLU(BN(Conv2d(x, bias=False))).

    x:      [N, C1, H, W]   (NCHW, f32)
    weight: [C2, C1, k, k]  (PyTorch Conv2d weight, groups=1)
    returns [N, C2, Ho, Wo] (NCHW, out_dtype)
    """
    N, C1, H, W = x.shape
    C2 = weight.shape[0]
    p = k // 2
    Ho = (H + 2 * p - k) // s + 1
    Wo = (W + 2 * p - k) // s + 1

    x_nhwc = jnp.transpose(x, (0, 2, 3, 1)).astype(jnp.bfloat16)
    w_hwio = jnp.transpose(weight, (2, 3, 1, 0)).astype(jnp.bfloat16)  # (k,k,C1,C2)

    # ---- Fold all taps into the contraction when it costs no extra HBM ------
    fold = _round_up(k * k * C1, 128) <= _round_up(C1, 128)
    if fold:
        if k > 1:
            x_sp = jnp.pad(x_nhwc, ((0, 0), (p, p), (p, p), (0, 0)))
            cols = []
            for dy in range(k):
                for dx in range(k):
                    cols.append(x_sp[:, dy:dy + (Ho - 1) * s + 1:s,
                                     dx:dx + (Wo - 1) * s + 1:s, :])
            a = jnp.concatenate(cols, axis=-1)          # (N, Ho, Wo, k*k*C1)
        else:
            a = x_nhwc if s == 1 else x_nhwc[:, ::s, ::s, :]
        wk = w_hwio.reshape(1, k * k * C1, C2)          # tap order (dy, dx, c)
        k_e, s_e, p_e, c1_e = 1, 1, 0, k * k * C1
    else:
        a = x_nhwc
        wk = w_hwio.reshape(k * k, C1, C2)
        k_e, s_e, p_e, c1_e = k, s, p, C1

    # ---- Tiling / lane-dense padding ----------------------------------------
    C1p = _round_up(c1_e, 128)
    C2p = _round_up(C2, 128)
    TN = 256 if C2p % 256 == 0 else 128                 # feed the 256-wide MXU
    m_sub = 32768 // TN                                 # acc <= 128 KiB
    Wo_p = _round_up(Wo, 8) if Wo <= 128 else _round_up(Wo, 128)
    TW = min(Wo_p, 128)
    if s_e == 1:
        th_sub = max(1, min(m_sub // TW, Ho))
    else:
        th_sub = 1                                      # unit-stride row reads
    n_hsub = max(1, min(_cdiv(Ho, th_sub),
                        max(1, tile_pixels // (th_sub * Wo_p))))
    TH = th_sub * n_hsub                                # output rows / grid step
    n_rt = _cdiv(Ho, TH)
    TH_in = (TH - 1) * s_e + k_e                        # input rows / window
    W_ph = (k_e - 1) // s_e + Wo_p                      # per-phase width

    # ---- Pad activation once (no row-window duplication) --------------------
    Ha, Wa = a.shape[1], a.shape[2]
    H_need = (n_rt - 1) * TH * s_e + TH_in
    W_need = (Wo_p - 1) * s_e + k_e
    a = jnp.pad(a, ((0, 0),
                    (p_e, max(0, H_need - Ha - p_e)),
                    (p_e, max(0, W_need - Wa - p_e)),
                    (0, C1p - c1_e)))
    if s_e > 1:
        # Phase-deinterleave W so strided convs read unit-stride columns.
        slabs = []
        for ph in range(s_e):
            sl = a[:, :, ph::s_e, :][:, :, :W_ph, :]
            if sl.shape[2] < W_ph:
                sl = jnp.pad(sl, ((0, 0), (0, 0),
                                  (0, W_ph - sl.shape[2]), (0, 0)))
            slabs.append(sl)
        a = jnp.concatenate(slabs, axis=2)
    H_pitch = a.shape[1]
    W_reg = a.shape[2]
    a_flat = a.reshape(N * H_pitch, W_reg, C1p)         # batch folded into rows

    # ---- Weight / fused BN params --------------------------------------------
    w_pal = jnp.pad(wk, ((0, 0), (0, C1p - c1_e), (0, C2p - C2)))
    scale = (gamma / jnp.sqrt(running_var + eps)).astype(jnp.float32)
    bias = (beta - running_mean * scale).astype(jnp.float32)
    scale = jnp.pad(scale, (0, C2p - C2)).reshape(1, C2p)
    bias = jnp.pad(bias, (0, C2p - C2)).reshape(1, C2p)

    kernel = functools.partial(
        _conv_bn_act_kernel, k=k_e, s=s_e, th_sub=th_sub, tw=TW, w_ph=W_ph,
        h_pitch=H_pitch, n_rt=n_rt, tn=TN, act=act)

    out_bytes = jnp.dtype(out_dtype).itemsize
    # Actual VMEM demand (+headroom), kept well under v7x's 64 MiB.
    vmem_bytes = (2 * TH_in * W_reg * C1p * 2           # input double buffer
                  + 2 * (k_e * k_e) * C1p * C2p * 2     # resident weight
                  + 2 * TH * Wo_p * C2p * out_bytes     # output double buffer
                  + 4 * C2p * 4)                        # scale/bias
    vmem_limit = min(max(int(1.5 * vmem_bytes) + (2 << 20), 16 << 20), 48 << 20)

    flops = 2 * N * Ho * Wo * C2 * C1 * k * k
    bytes_accessed = (a_flat.size * 2 + w_pal.size * 2
                      + N * n_rt * TH * Wo_p * C2p * out_bytes
                      + (scale.size + bias.size) * 4)

    out = pl.pallas_call(
        kernel,
        out_shape=jax.ShapeDtypeStruct((N, n_rt * TH, Wo_p, C2p), out_dtype),
        grid_spec=pltpu.PrefetchScalarGridSpec(
            num_scalar_prefetch=0,
            grid=(N, n_rt),
            in_specs=[
                pl.BlockSpec(memory_space=pl.ANY),               # activation (HBM)
                pl.BlockSpec((k_e * k_e, C1p, C2p), lambda b, r: (0, 0, 0)),
                pl.BlockSpec((1, C2p), lambda b, r: (0, 0)),
                pl.BlockSpec((1, C2p), lambda b, r: (0, 0)),
            ],
            out_specs=pl.BlockSpec((1, TH, Wo_p, C2p), lambda b, r: (b, r, 0, 0)),
            scratch_shapes=[
                pltpu.VMEM((2, TH_in, W_reg, C1p), jnp.bfloat16),
                pltpu.SemaphoreType.DMA((2,)),
            ],
        ),
        compiler_params=pltpu.CompilerParams(
            dimension_semantics=("parallel", "arbitrary"),
            vmem_limit_bytes=vmem_limit,
        ),
        cost_estimate=pl.CostEstimate(flops=int(flops), transcendentals=0,
                                      bytes_accessed=int(bytes_accessed)),
    )(a_flat, w_pal, scale, bias)

    out = out[:, :Ho, :Wo, :C2]                         # drop row/col/ch padding
    return jnp.transpose(out, (0, 3, 1, 2))             # back to NCHW


def _reference(x, weight, gamma, beta, running_mean, running_var, k, s,
               eps=1e-5):
    """Plain-JAX reference (bf16-rounded inputs to match the kernel's MXU path)."""
    pad = k // 2
    xb = x.astype(jnp.bfloat16).astype(jnp.float32)
    wb = weight.astype(jnp.bfloat16).astype(jnp.float32)
    y = jax.lax.conv_general_dilated(
        xb, wb, window_strides=(s, s), padding=((pad, pad), (pad, pad)),
        dimension_numbers=("NCHW", "OIHW", "NCHW"),
        precision=jax.lax.Precision.HIGHEST)
    scale = (gamma / jnp.sqrt(running_var + eps)).reshape(1, -1, 1, 1)
    bias = (beta - running_mean * gamma / jnp.sqrt(running_var + eps)
            ).reshape(1, -1, 1, 1)
    y = y * scale + bias
    return jnp.where(y > 0, y, 0.1 * y)


if __name__ == "__main__":
    def make_params(key, c1, c2, k):
        kw, kg, kb, km, kv = jax.random.split(key, 5)
        weight = 0.1 * jax.random.normal(kw, (c2, c1, k, k), dtype=jnp.float32)
        gamma = 1.0 + 0.1 * jax.random.normal(kg, (c2,), dtype=jnp.float32)
        beta = 0.1 * jax.random.normal(kb, (c2,), dtype=jnp.float32)
        mean = 0.1 * jax.random.normal(km, (c2,), dtype=jnp.float32)
        var = jnp.abs(jax.random.normal(kv, (c2,), dtype=jnp.float32)) + 0.5
        return weight, gamma, beta, mean, var

    key = jax.random.PRNGKey(0)
    configs = [
        # spec shapes: small-C1 folded-tap path
        dict(N=2, C1=4, H=16, W=16, C2=8, k=3, s=1, tile_pixels=1024),
        # 1x1 conv (module default k=1)
        dict(N=2, C1=16, H=16, W=16, C2=32, k=1, s=1, tile_pixels=1024),
        # tap path, ragged Wo (26 -> 32), multiple DMA-pipelined row tiles
        dict(N=1, C1=24, H=26, W=26, C2=40, k=3, s=1, tile_pixels=256),
        # tap path, stride 2, odd spatial size (phase-deinterleaved W)
        dict(N=1, C1=32, H=17, W=17, C2=48, k=3, s=2, tile_pixels=1024),
    ]

    for i, cfg in enumerate(configs):
        key, kx, kp = jax.random.split(key, 3)
        x = jax.random.normal(kx, (cfg["N"], cfg["C1"], cfg["H"], cfg["W"]),
                              dtype=jnp.float32)
        weight, gamma, beta, mean, var = make_params(kp, cfg["C1"], cfg["C2"],
                                                     cfg["k"])
        out = conv_forward(x, weight, gamma, beta, mean, var,
                           k=cfg["k"], s=cfg["s"],
                           tile_pixels=cfg["tile_pixels"])
        out = jax.block_until_ready(out).astype(jnp.float32)
        ref = _reference(x, weight, gamma, beta, mean, var, cfg["k"], cfg["s"])
        assert out.shape == ref.shape, (i, out.shape, ref.shape)
        err = float(jnp.max(jnp.abs(out - ref)))
        # Output is stored in bf16 -> tolerance covers one bf16 ulp at |y|~10.
        assert jnp.allclose(out, ref, atol=4e-2, rtol=3e-2), \
            f"config {i} mismatch: max abs err {err}"

    print("KERNEL_OK")
</pallas_src>

<mosaic_0001>
module attributes {stable_mosaic.version = 11 : i64} {
  func.func @_conv_bn_act_kernel(%arg0: i32, %arg1: i32, %arg2: memref<32x16x128xbf16, #tpu.memory_space<any>>, %arg3: memref<1x128x128xbf16, #tpu.memory_space<vmem>>, %arg4: memref<1x128xf32, #tpu.memory_space<vmem>>, %arg5: memref<1x128xf32, #tpu.memory_space<vmem>>, %arg6: memref<1x16x16x128xbf16, #tpu.memory_space<vmem>>, %arg7: memref<2x16x16x128xbf16, #tpu.memory_space<vmem>>, %arg8: memref<2x!tpu.dma_semaphore, #tpu.memory_space<semaphore_mem>>) attributes {dimension_semantics = [#tpu.dimension_semantics<parallel>, #tpu.dimension_semantics<arbitrary>], iteration_bounds = array<i64: 2, 1>, scalar_prefetch = 0 : i64, scratch_operands = 2 : i64, tpu.core_type = #tpu.core_type<tc>, window_params = [{}, {pipeline_mode = #tpu.pipeline_mode<synchronous>, transform_indices = @transform_1, window_bounds = array<i64: 1, 128, 128>}, {pipeline_mode = #tpu.pipeline_mode<synchronous>, transform_indices = @transform_2, window_bounds = array<i64: 1, 128>}, {pipeline_mode = #tpu.pipeline_mode<synchronous>, transform_indices = @transform_3, window_bounds = array<i64: 1, 128>}, {transform_indices = @transform_4, window_bounds = array<i64: 1, 16, 16, 128>}]} {
    %c2_i32 = arith.constant 2 : i32
    %c0_i32 = arith.constant 0 : i32
    %0 = arith.cmpi eq, %c2_i32, %c0_i32 : i32
    %c1_i32 = arith.constant 1 : i32
    %1 = arith.select %0, %c1_i32, %c2_i32 : i32
    %2 = arith.remsi %arg1, %1 : i32
    %c0_i32_0 = arith.constant 0 : i32
    %3 = arith.cmpi ne, %2, %c0_i32_0 : i32
    %c0_i32_1 = arith.constant 0 : i32
    %4 = arith.cmpi slt, %2, %c0_i32_1 : i32
    %c0_i32_2 = arith.constant 0 : i32
    %5 = arith.cmpi slt, %1, %c0_i32_2 : i32
    %6 = arith.xori %4, %5 : i1
    %7 = arith.andi %6, %3 : i1
    %8 = arith.addi %2, %1 : i32
    %9 = arith.select %7, %8, %2 : i32
    %c0_i32_3 = arith.constant 0 : i32
    %10 = arith.cmpi eq, %arg1, %c0_i32_3 : i32
    %11 = arith.extui %10 : i1 to i32
    %c0_i32_4 = arith.constant 0 : i32
    %12 = arith.cmpi ne, %11, %c0_i32_4 : i32
    scf.if %12 {
      %c16_i32_27 = arith.constant 16 : i32
      %46 = arith.muli %arg0, %c16_i32_27 : i32
      %c16_i32_28 = arith.constant 16 : i32
      %47 = arith.muli %arg1, %c16_i32_28 : i32
      %48 = arith.addi %46, %47 : i32
      %c0_i32_29 = arith.constant 0 : i32
      %c0_i32_30 = arith.constant 0 : i32
      %49 = tpu.memref_slice %arg2[%48, %c0_i32_29, %c0_i32_30] : memref<32x16x128xbf16, #tpu.memory_space<any>> -> memref<16x16x128xbf16, #tpu.memory_space<any>>
      %c0_i32_31 = arith.constant 0 : i32
      %c0_i32_32 = arith.constant 0 : i32
      %c0_i32_33 = arith.constant 0 : i32
      %50 = tpu.memref_slice %arg7[%9, %c0_i32_31, %c0_i32_32, %c0_i32_33] : memref<2x16x16x128xbf16, #tpu.memory_space<vmem>> -> memref<1x16x16x128xbf16, #tpu.memory_space<vmem>>
      %51 = tpu.memref_squeeze %50 : memref<1x16x16x128xbf16, #tpu.memory_space<vmem>> -> memref<16x16x128xbf16, #tpu.memory_space<vmem>>
      %52 = tpu.memref_slice %arg8[%9] : memref<2x!tpu.dma_semaphore, #tpu.memory_space<semaphore_mem>> -> memref<1x!tpu.dma_semaphore, #tpu.memory_space<semaphore_mem>>
      %53 = tpu.memref_squeeze %52 : memref<1x!tpu.dma_semaphore, #tpu.memory_space<semaphore_mem>> -> memref<!tpu.dma_semaphore, #tpu.memory_space<semaphore_mem>>
      tpu.enqueue_dma source(%49 : memref<16x16x128xbf16, #tpu.memory_space<any>>) target(%51 : memref<16x16x128xbf16, #tpu.memory_space<vmem>>) target_semaphore(%53 : memref<!tpu.dma_semaphore, #tpu.memory_space<semaphore_mem>>)
    } else {
    }
    %c16_i32 = arith.constant 16 : i32
    %13 = arith.muli %arg0, %c16_i32 : i32
    %c16_i32_5 = arith.constant 16 : i32
    %14 = arith.muli %arg1, %c16_i32_5 : i32
    %15 = arith.addi %13, %14 : i32
    %c0_i32_6 = arith.constant 0 : i32
    %c0_i32_7 = arith.constant 0 : i32
    %16 = tpu.memref_slice %arg2[%15, %c0_i32_6, %c0_i32_7] : memref<32x16x128xbf16, #tpu.memory_space<any>> -> memref<16x16x128xbf16, #tpu.memory_space<any>>
    %c0_i32_8 = arith.constant 0 : i32
    %c0_i32_9 = arith.constant 0 : i32
    %c0_i32_10 = arith.constant 0 : i32
    %17 = tpu.memref_slice %arg7[%9, %c0_i32_8, %c0_i32_9, %c0_i32_10] : memref<2x16x16x128xbf16, #tpu.memory_space<vmem>> -> memref<1x16x16x128xbf16, #tpu.memory_space<vmem>>
    %18 = tpu.memref_squeeze %17 : memref<1x16x16x128xbf16, #tpu.memory_space<vmem>> -> memref<16x16x128xbf16, #tpu.memory_space<vmem>>
    %19 = tpu.memref_slice %arg8[%9] : memref<2x!tpu.dma_semaphore, #tpu.memory_space<semaphore_mem>> -> memref<1x!tpu.dma_semaphore, #tpu.memory_space<semaphore_mem>>
    %20 = tpu.memref_squeeze %19 : memref<1x!tpu.dma_semaphore, #tpu.memory_space<semaphore_mem>> -> memref<!tpu.dma_semaphore, #tpu.memory_space<semaphore_mem>>
    tpu.wait_dma2 semaphore(%20 : memref<!tpu.dma_semaphore, #tpu.memory_space<semaphore_mem>>) src(%16 : memref<16x16x128xbf16, #tpu.memory_space<any>>) dst(%18 : memref<16x16x128xbf16, #tpu.memory_space<vmem>>)
    %cst = arith.constant 0.000000e+00 : f32
    %21 = vector.broadcast %cst : f32 to vector<256x128xf32>
    %22 = arith.index_cast %9 : i32 to index
    %c0 = arith.constant 0 : index
    %c0_11 = arith.constant 0 : index
    %c0_12 = arith.constant 0 : index
    %23 = vector.load %arg7[%22, %c0, %c0_11, %c0_12] : memref<2x16x16x128xbf16, #tpu.memory_space<vmem>>, vector<1x16x16x128xbf16>
    %24 = vector.shape_cast %23 : vector<1x16x16x128xbf16> to vector<16x16x128xbf16>
    %25 = vector.shape_cast %24 : vector<16x16x128xbf16> to vector<256x128xbf16>
    %c0_13 = arith.constant 0 : index
    %c0_14 = arith.constant 0 : index
    %c0_15 = arith.constant 0 : index
    %26 = vector.load %arg3[%c0_13, %c0_14, %c0_15] : memref<1x128x128xbf16, #tpu.memory_space<vmem>>, vector<1x128x128xbf16>
    %27 = vector.shape_cast %26 : vector<1x128x128xbf16> to vector<128x128xbf16>
    %cst_16 = arith.constant dense<0.000000e+00> : vector<256x128xf32>
    %28 = tpu.matmul %25, %27, %cst_16 {dimension_numbers = #tpu.dot_dimension_numbers<[1], [0], [0], [1], [0, 0, 1, 1], [], []>} : vector<256x128xbf16>, vector<128x128xbf16>, vector<256x128xf32> -> vector<256x128xf32>
    %29 = arith.addf %21, %28 : vector<256x128xf32>
    %c0_17 = arith.constant 0 : index
    %c0_18 = arith.constant 0 : index
    %30 = vector.load %arg4[%c0_17, %c0_18] : memref<1x128xf32, #tpu.memory_space<vmem>>, vector<1x128xf32>
    %31 = vector.broadcast %30 : vector<1x128xf32> to vector<256x128xf32>
    %32 = arith.mulf %29, %31 : vector<256x128xf32>
    %c0_19 = arith.constant 0 : index
    %c0_20 = arith.constant 0 : index
    %33 = vector.load %arg5[%c0_19, %c0_20] : memref<1x128xf32, #tpu.memory_space<vmem>>, vector<1x128xf32>
    %34 = vector.broadcast %33 : vector<1x128xf32> to vector<256x128xf32>
    %35 = arith.addf %32, %34 : vector<256x128xf32>
    %cst_21 = arith.constant 0.000000e+00 : f32
    %36 = vector.broadcast %cst_21 : f32 to vector<256x128xf32>
    %37 = arith.cmpf ogt, %35, %36 : vector<256x128xf32>
    %cst_22 = arith.constant 1.000000e-01 : f32
    %38 = vector.broadcast %cst_22 : f32 to vector<256x128xf32>
    %39 = arith.mulf %38, %35 : vector<256x128xf32>
    %40 = arith.select %37, %35, %39 : vector<256x128xi1>, vector<256x128xf32>
    %41 = arith.truncf %40 : vector<256x128xf32> to vector<256x128xbf16>
    %42 = vector.shape_cast %41 : vector<256x128xbf16> to vector<16x16x128xbf16>
    %c0_23 = arith.constant 0 : index
    %c0_24 = arith.constant 0 : index
    %c0_25 = arith.constant 0 : index
    %c0_26 = arith.constant 0 : index
    %43 = vector.load %arg6[%c0_23, %c0_24, %c0_25, %c0_26] : memref<1x16x16x128xbf16, #tpu.memory_space<vmem>>, vector<1x16x16x128xbf16>
    %44 = vector.shape_cast %43 : vector<1x16x16x128xbf16> to vector<16x16x128xbf16>
    %45 = vector.shape_cast %42 : vector<16x16x128xbf16> to vector<1x16x16x128xbf16>
    tpu.vector_store %arg6[%c0_23, %c0_24, %c0_25, %c0_26], %45 {strides = array<i32>} : memref<1x16x16x128xbf16, #tpu.memory_space<vmem>>, vector<1x16x16x128xbf16>,
    return
  }
  func.func @transform_1(%arg0: i32, %arg1: i32) -> (i32, i32, i32) {
    %c0_i32 = arith.constant 0 : i32
    %c0_i32_0 = arith.constant 0 : i32
    %c0_i32_1 = arith.constant 0 : i32
    %c0_i32_2 = arith.constant 0 : i32
    return %c0_i32, %c0_i32_0, %c0_i32_1 : i32, i32, i32
  }
  func.func @transform_2(%arg0: i32, %arg1: i32) -> (i32, i32) {
    %c0_i32 = arith.constant 0 : i32
    %c0_i32_0 = arith.constant 0 : i32
    %c0_i32_1 = arith.constant 0 : i32
    return %c0_i32, %c0_i32_0 : i32, i32
  }
  func.func @transform_3(%arg0: i32, %arg1: i32) -> (i32, i32) {
    %c0_i32 = arith.constant 0 : i32
    %c0_i32_0 = arith.constant 0 : i32
    %c0_i32_1 = arith.constant 0 : i32
    return %c0_i32, %c0_i32_0 : i32, i32
  }
  func.func @transform_4(%arg0: i32, %arg1: i32) -> (i32, i32, i32, i32) {
    %c0_i32 = arith.constant 0 : i32
    %c0_i32_0 = arith.constant 0 : i32
    %c0_i32_1 = arith.constant 0 : i32
    return %arg0, %arg1, %c0_i32, %c0_i32_0 : i32, i32, i32, i32
  }
}

</mosaic_0001>

<llo_original>
// kernel: conv_forward.1
$region0: #{conv_forward.1}
  #allocation0 [shape = 'u32[]', space=smem, size = 0x4, offset = 0x4, fixed_abs, tag = 'smem constant byte address 0x4 - core index']
  #allocation1 [shape = 'u32[144,128]{1,0:T(1,128)}', space=vmem, size = 0x12000, scoped, tag = 'internal scratch']
  #allocation2 [shape = 'bf16[2,16,16,128]{3,2,1,0:T(16,128)(2,1)}', space=vmem, size = 0x20000, scoped, tag = 'scratch operand']
  #allocation3 [shape = 's32[2]{0}', space=sflag, size = 0x8, scoped, tag = 'scratch operand']
  #allocation4 [shape = 's32[]', space=sflag, size = 0x4, offset = 0, fixed_abs, tag = 'sflag constant byte address 0x0 - dummy sync flag']
  %s0 = inlined_call_operand.vmem [shape: bf16[32,16,128], index: 0, kind: input, shape index: {}]
  %s1 = inlined_call_operand.vmem [shape: bf16[1,128,128], index: 1, kind: input, shape index: {}]
  %s2 = inlined_call_operand.vmem [shape: f32[1,128], index: 2, kind: input, shape index: {}]
  %s3 = inlined_call_operand.vmem [shape: f32[1,128], index: 3, kind: input, shape index: {}]
  %s4 = inlined_call_operand.vmem [shape: bf16[2,16,16,128], index: 4, kind: output, shape index: {}]
  %s5 = sld [smem:[#allocation0]]
  $region83: #{conv_forward.1} parent=0
    _
  %s7 = ssub.s32 1, %s5
  %s8 = scalar_select 0, %s7, %s5
  loop: start=0, step=1, limit=4
  $region2: #{conv_forward.1} parent=0 // loop_pre_header
    _
  $region3: #{conv_forward.1} parent=0 // loop_header
    %s10 = sphi 0, %s14
    %p11 = scmp.ge.s32.totalorder %s10, 4
    %s17 = sphi 0, %s29
    %s18 = sphi 0, %s25
    %s19 = sphi 0, %s17
    %s20 = sphi 0, %s18
    %s21 = sphi 0, %s19
    %s22 = sphi 0, %s20
    %s30 = sphi 0, %s30
    %s32 = sphi 0, %s30
    %s33 = sphi 0, %s32
    %s47 = sphi 0, %s33
    %s51 = sphi 0, %s51
    %s53 = sphi 0, %s51
    %s54 = sphi 0, %s53
    %s68 = sphi 0, %s54
    %s72 = sphi 0, %s72
    %s74 = sphi 0, %s72
    %s75 = sphi 0, %s74
    %s89 = sphi 0, %s75
    %s97 = sphi 0, %s99
    %s100 = sphi 0, %s97
    %s101 = sphi 0, %s100
    %s117 = sphi 0, %s101
  $region4: #{conv_forward.1} parent=0 // loop_header_branch
    %13 = sbr.rel (%p11) target = $region8
  $region5: #{conv_forward.1} parent=0 // loop_body
    %s15 = ssub.s32 %s10, 1
    %s16 = ssub.s32 %s10, 2
    %s23 = sadd.s32 1, %s18
    %p24 = scmp.ge.s32.totalorder %s23, 1
    %s25 = scalar_select %p24, 0, %s23
    %s26 = sadd.s32 1, %s17
    %s27 = scalar_select %p24, %s26, %s17
    %p28 = scmp.ge.s32.totalorder %s27, 2
    %s29 = scalar_select %p28, 0, %s27
    %s31 = sadd.s32 %s30, 1
    %p34 = scmp.eq.s32.totalorder %s10, 1
    %p35 = scmp.ne.s32.totalorder %s30, %s32
    %p36 = scmp.eq.s32.totalorder %s10, 0
    %p37 = por %p35, %p36
    %p38 = scmp.ne.s32.totalorder %s30, %s32
    %p39 = scmp.eq.s32.totalorder %s15, 1
    %p40 = por %p38, %p39
    %p41 = scmp.ne.s32.totalorder %s32, %s33
    %p42 = scmp.eq.s32.totalorder %s15, 0
    %p43 = por %p41, %p42
    %p44 = scmp.ne.s32.totalorder %s32, %s33
    %p45 = scmp.eq.s32.totalorder %s16, 1
    %p46 = por %p44, %p45
    %p48 = scmp.ne.s32.totalorder %s33, %s47
    %p49 = scmp.eq.s32.totalorder %s16, 0
    %p50 = por %p48, %p49
    %s52 = sadd.s32 %s51, 1
    %p55 = scmp.eq.s32.totalorder %s10, 1
    %p56 = scmp.ne.s32.totalorder %s51, %s53
    %p57 = scmp.eq.s32.totalorder %s10, 0
    %p58 = por %p56, %p57
    %p59 = scmp.ne.s32.totalorder %s51, %s53
    %p60 = scmp.eq.s32.totalorder %s15, 1
    %p61 = por %p59, %p60
    %p62 = scmp.ne.s32.totalorder %s53, %s54
    %p63 = scmp.eq.s32.totalorder %s15, 0
    %p64 = por %p62, %p63
    %p65 = scmp.ne.s32.totalorder %s53, %s54
    %p66 = scmp.eq.s32.totalorder %s16, 1
    %p67 = por %p65, %p66
    %p69 = scmp.ne.s32.totalorder %s54, %s68
    %p70 = scmp.eq.s32.totalorder %s16, 0
    %p71 = por %p69, %p70
    %s73 = sadd.s32 %s72, 1
    %p76 = scmp.eq.s32.totalorder %s10, 1
    %p77 = scmp.ne.s32.totalorder %s72, %s74
    %p78 = scmp.eq.s32.totalorder %s10, 0
    %p79 = por %p77, %p78
    %p80 = scmp.ne.s32.totalorder %s72, %s74
    %p81 = scmp.eq.s32.totalorder %s15, 1
    %p82 = por %p80, %p81
    %p83 = scmp.ne.s32.totalorder %s74, %s75
    %p84 = scmp.eq.s32.totalorder %s15, 0
    %p85 = por %p83, %p84
    %p86 = scmp.ne.s32.totalorder %s74, %s75
    %p87 = scmp.eq.s32.totalorder %s16, 1
    %p88 = por %p86, %p87
    %p90 = scmp.ne.s32.totalorder %s75, %s89
    %p91 = scmp.eq.s32.totalorder %s16, 0
    %p92 = por %p90, %p91
    %s93 = ssub.s32 %s17, %s29
    %s94 = ssub.s32 %s18, %s25
    %s95 = sor.u32 %s93, %s94
    %p96 = scmp.eq.s32.totalorder %s95, 0
    %s98 = sadd.s32 %s97, 1
    %s99 = scalar_select %p96, %s97, %s98
    %p102 = pneg %p96
    %p103 = scmp.eq.s32.totalorder %s10, 1
    %p104 = por %p102, %p103
    %p105 = scmp.ne.s32.totalorder %s97, %s100
    %p106 = scmp.eq.s32.totalorder %s10, 0
    %p107 = por %p105, %p106
    %p108 = scmp.ne.s32.totalorder %s97, %s100
    %p109 = scmp.eq.s32.totalorder %s15, 1
    %p110 = por %p108, %p109
    %p111 = scmp.ne.s32.totalorder %s100, %s101
    %p112 = scmp.eq.s32.totalorder %s15, 0
    %p113 = por %p111, %p112
    %p114 = scmp.ne.s32.totalorder %s100, %s101
    %p115 = scmp.eq.s32.totalorder %s16, 1
    %p116 = por %p114, %p115
    %p118 = scmp.ne.s32.totalorder %s101, %s117
    %p119 = scmp.eq.s32.totalorder %s16, 0
    %p120 = por %p118, %p119
    %p121 = scmp.le.s32.totalorder 1, %s10
    %p122 = scmp.lt.s32.totalorder %s10, 3
    %p123 = pnand %p121, %p122
    %p124 = pneg %p123
    // Predicated region
    $region9: #{conv_forward.1} parent=5 // pred_check
      _
    $region10: #{conv_forward.1} parent=5 // pred_check_branch
      %126 = sbr.rel (%p123) target = $region12
    $region11: #{conv_forward.1} parent=5 // pred_region
      %s127 = ssub.s32 %s10, 1
      // Predicated region
      $region13: #{conv_forward.1} parent=11 // pred_check
        %p128 = pneg %p43
      $region14: #{conv_forward.1} parent=11 // pred_check_branch
        %130 = sbr.rel (%p128) target = $region16
      $region15: #{conv_forward.1} parent=11 // pred_region
        _
      $region16: #{conv_forward.1} parent=11 // pred_fallthru
        _
      // Predicated region
      $region17: #{conv_forward.1} parent=11 // pred_check
        %p131 = pneg %p64
      $region18: #{conv_forward.1} parent=11 // pred_check_branch
        %133 = sbr.rel (%p131) target = $region20
      $region19: #{conv_forward.1} parent=11 // pred_region
        _
      $region20: #{conv_forward.1} parent=11 // pred_fallthru
        _
      // Predicated region
      $region21: #{conv_forward.1} parent=11 // pred_check
        %p134 = pneg %p85
      $region22: #{conv_forward.1} parent=11 // pred_check_branch
        %136 = sbr.rel (%p134) target = $region24
      $region23: #{conv_forward.1} parent=11 // pred_region
        _
      $region24: #{conv_forward.1} parent=11 // pred_fallthru
        _
    $region12: #{conv_forward.1} parent=5 // pred_fallthru
      _
    %p137 = scmp.lt.s32.totalorder %s10, 2
    // Predicated region
    $region25: #{conv_forward.1} parent=5 // pred_check
      %p138 = pneg %p137
    $region26: #{conv_forward.1} parent=5 // pred_check_branch
      %140 = sbr.rel (%p138) target = $region28
    $region27: #{conv_forward.1} parent=5 // pred_region
      _
    $region28: #{conv_forward.1} parent=5 // pred_fallthru
      _
    %p141 = scmp.le.s32.totalorder 1, %s10
    %p142 = scmp.lt.s32.totalorder %s10, 3
    %p143 = pnand %p141, %p142
    %p144 = pneg %p143
    // Predicated region
    $region29: #{conv_forward.1} parent=5 // pred_check
      _
    $region30: #{conv_forward.1} parent=5 // pred_check_branch
      %146 = sbr.rel (%p143) target = $region32
    $region31: #{conv_forward.1} parent=5 // pred_region
      %s147 = ssub.s32 %s10, 1
      %p148 = pneg %p43
      %p149 = pneg %p40
      %p150 = pneg %p64
      %p151 = pneg %p61
      %p152 = pneg %p85
      %p153 = pneg %p82
      %p154 = pneg %p113
      %p155 = pneg %p110
      %s156 = smul.u32 16, %s20
      %p157 = scmp.lt.s32.totalorder %s19, 1
      %s158 = scalar_select %p157, %s19, 1
      %p159 = scmp.lt.s32.totalorder %s156, 15
      %s160 = scalar_select %p159, %s156, 15
      %s161 = smul.addr %s160, 2
      %s162 = smul.addr %s158, 32
      %s163 = sadd.s32 %s161, %s162
      %s164 = smul.addr %s163, 4
      %s165 = scalar_lea.vmem %s4, %s164
      %s166 = smul.u32 16, %s20
      %p167 = scmp.lt.s32.totalorder %s19, 1
      %s168 = scalar_select %p167, %s19, 1
      %p169 = scmp.lt.s32.totalorder %s166, 15
      %s170 = scalar_select %p169, %s166, 15
      %s171 = smul.addr %s170, 2
      %s172 = smul.addr %s168, 32
      %s173 = sadd.s32 %s171, %s172
      %s174 = smul.addr %s173, 4
      %s175 = scalar_lea.vmem %s4, %s174
      %s176 = smul.u32 16, %s20
      %p178 = scmp.lt.s32.totalorder %s20, 0
      %s179 = ssub.s32 0, %s20
      %s180 = scalar_select %p178, %s179, %s20
      %s181 = sand.u32 %s180, 1
      %s182 = ssub.s32 0, %s181
      %s183 = scalar_select %p178, %s182, %s181
      %p184 = scmp.ne.s32.totalorder %s183, 0
      %p185 = scmp.lt.s32.totalorder %s183, 0
      %p186 = pnand %p185, %p184
      %p187 = pneg %p186
      %s188 = sadd.s32 %s183, 2
      %s189 = scalar_select %p187, %s188, %s183
      %p190 = scmp.eq.s32.totalorder %s20, 0
      // Predicated region
      $region33: #{conv_forward.1} parent=31 // pred_check
        %p191 = pneg %p190
      $region34: #{conv_forward.1} parent=31 // pred_check_branch
        %193 = sbr.rel (%p191) target = $region36
      $region35: #{conv_forward.1} parent=31 // pred_region
        %s194 = smul.u32 %s19, 16
        %s195 = smul.u32 %s20, 16
        %s196 = sadd.s32 %s194, %s195
        %s197 = smul.u32 %s196, 2
        %s198 = smul.addr %s197, 4
        %s199 = scalar_lea.vmem %s0, %s198
        %s200 = smul.u32 %s189, 16
        %s201 = smul.addr %s200, 8
        %s202 = scalar_lea.vmem [#allocation2], %s201
        %s203 = scalar_lea.sflag [#allocation3], %s189
        %p205 = scmp.lt.u32.totalorder 128, 8
        %p206 = pneg %p205
        // Predicated region
        $region37: #{conv_forward.1} parent=35 // pred_check
          _
        $region38: #{conv_forward.1} parent=35 // pred_check_branch
          %208 = sbr.rel (%p205) target = $region40
        $region39: #{conv_forward.1} parent=35 // pred_region
          %s223 = sand.u32 128, 7
          %p224 = scmp.eq.s32.totalorder %s223, 0
          // Predicated region
          $region52: #{conv_forward.1} parent=39 // pred_check
            %p225 = pneg %p224
          $region53: #{conv_forward.1} parent=39 // pred_check_branch
            %227 = sbr.rel (%p225) target = $region55
          $region54: #{conv_forward.1} parent=39 // pred_region
            loop: start=0, step=1, limit=1
            $region56: #{conv_forward.1} parent=54 // loop_pre_header
              _
            $region57: #{conv_forward.1} parent=54 // loop_header
              %s229 = sphi 0, %s233
              %p230 = scmp.ge.s32.totalorder %s229, 1
              %s234 = sphi %s199, %s199
              %s235 = sphi %s202, %s202
            $region58: #{conv_forward.1} parent=54 // loop_header_branch
              %232 = sbr.rel (%p230) target = $region62
            $region59: #{conv_forward.1} parent=54 // loop_body
              %v236 = vld [vmem:[%s234] sm:$0xff]
              %237 = vst [vmem:[%s235] sm:$0xff] %v236
              %v238 = vld [vmem:[%s234 + $0x8] sm:$0xff]
              %239 = vst [vmem:[%s235 + $0x8] sm:$0xff] %v238
              %v240 = vld [vmem:[%s234 + $0x10] sm:$0xff]
              %241 = vst [vmem:[%s235 + $0x10] sm:$0xff] %v240
              %v242 = vld [vmem:[%s234 + $0x18] sm:$0xff]
              %243 = vst [vmem:[%s235 + $0x18] sm:$0xff] %v242
              %v244 = vld [vmem:[%s234 + $0x20] sm:$0xff]
              %245 = vst [vmem:[%s235 + $0x20] sm:$0xff] %v244
              %v246 = vld [vmem:[%s234 + $0x28] sm:$0xff]
              %247 = vst [vmem:[%s235 + $0x28] sm:$0xff] %v246
              %v248 = vld [vmem:[%s234 + $0x30] sm:$0xff]
              %249 = vst [vmem:[%s235 + $0x30] sm:$0xff] %v248
              %v250 = vld [vmem:[%s234 + $0x38] sm:$0xff]
              %251 = vst [vmem:[%s235 + $0x38] sm:$0xff] %v250
              %v252 = vld [vmem:[%s234 + $0x40] sm:$0xff]
              %253 = vst [vmem:[%s235 + $0x40] sm:$0xff] %v252
              %v254 = vld [vmem:[%s234 + $0x48] sm:$0xff]
              %255 = vst [vmem:[%s235 + $0x48] sm:$0xff] %v254
              %v256 = vld [vmem:[%s234 + $0x50] sm:$0xff]
              %257 = vst [vmem:[%s235 + $0x50] sm:$0xff] %v256
              %v258 = vld [vmem:[%s234 + $0x58] sm:$0xff]
              %259 = vst [vmem:[%s235 + $0x58] sm:$0xff] %v258
              %v260 = vld [vmem:[%s234 + $0x60] sm:$0xff]
              %261 = vst [vmem:[%s235 + $0x60] sm:$0xff] %v260
              %v262 = vld [vmem:[%s234 + $0x68] sm:$0xff]
              %263 = vst [vmem:[%s235 + $0x68] sm:$0xff] %v262
              %v264 = vld [vmem:[%s234 + $0x70] sm:$0xff]
              %265 = vst [vmem:[%s235 + $0x70] sm:$0xff] %v264
              %v266 = vld [vmem:[%s234 + $0x78] sm:$0xff]
              %267 = vst [vmem:[%s235 + $0x78] sm:$0xff] %v266
            $region60: #{conv_forward.1} parent=54 // loop_footer
              %s233 = sadd.s32 1, %s229
            $region61: #{conv_forward.1} parent=54 // loop_footer_branch
              %228 = sbr.rel target = $region57
            $region62: #{conv_forward.1} parent=54 // loop_exit
              _
          $region55: #{conv_forward.1} parent=39 // pred_fallthru
            _
          %p268 = pneg %p224
          // Predicated region
          $region63: #{conv_forward.1} parent=39 // pred_check
            _
          $region64: #{conv_forward.1} parent=39 // pred_check_branch
            %270 = sbr.rel (%p224) target = $region66
          $region65: #{conv_forward.1} parent=39 // pred_region
            %s271 = sand.u32 128, 7
          $region66: #{conv_forward.1} parent=39 // pred_fallthru
            _
        $region40: #{conv_forward.1} parent=35 // pred_fallthru
          _
        // Predicated region
        $region41: #{conv_forward.1} parent=35 // pred_check
          %p209 = pneg %p205
        $region42: #{conv_forward.1} parent=35 // pred_check_branch
          %211 = sbr.rel (%p209) target = $region44
        $region43: #{conv_forward.1} parent=35 // pred_region
          %s212 = sshllo.u32 0, 128
          loop: start=0, step=1, limit=1
          $region45: #{conv_forward.1} parent=43 // loop_pre_header
            _
          $region46: #{conv_forward.1} parent=43 // loop_header
            %s214 = sphi 0, %s218
            %p215 = scmp.ge.s32.totalorder %s214, 1
            %s219 = sphi %s199, %s199
            %s220 = sphi %s202, %s202
          $region47: #{conv_forward.1} parent=43 // loop_header_branch
            %217 = sbr.rel (%p215) target = $region51
          $region48: #{conv_forward.1} parent=43 // loop_body
            %v221 = vld [vmem:[%s219] sm:%s212]
            %222 = vst [vmem:[%s220] sm:%s212] %v221
          $region49: #{conv_forward.1} parent=43 // loop_footer
            %s218 = sadd.s32 1, %s214
          $region50: #{conv_forward.1} parent=43 // loop_footer_branch
            %213 = sbr.rel target = $region46
          $region51: #{conv_forward.1} parent=43 // loop_exit
            _
        $region44: #{conv_forward.1} parent=35 // pred_fallthru
          _
        // Predicated region
        $region67: #{conv_forward.1} parent=35 // pred_check
          _
        $region68: #{conv_forward.1} parent=35 // pred_check_branch
          %274 = sbr.rel (0) target = $region70
        $region69: #{conv_forward.1} parent=35 // pred_region
          %275 = vsyncadd %s203, 2048
        $region70: #{conv_forward.1} parent=35 // pred_fallthru
          _
      $region36: #{conv_forward.1} parent=31 // pred_fallthru
        _
      %s276 = smul.u32 %s189, 16
      %s277 = smul.addr %s276, 8
      %s278 = scalar_lea.vmem [#allocation2], %s277
      %s279 = scalar_lea.sflag [#allocation3], %s189
      %s280 = smul.u32 4, 16
      %s281 = smul.u32 %s280, 2
      %s282 = smul.u32 %s281, 1
      %s283 = sshll.u32 %s282, 4
      %284 = dma.done %s279, %s283
      %v285 = vld [vmem:[%s278] sm:$0xff]
      %v286 = vld [vmem:[%s278 + $0x8] sm:$0xff]
      %v287 = vld [vmem:[%s278 + $0x10] sm:$0xff]
      %v288 = vld [vmem:[%s278 + $0x18] sm:$0xff]
      %v289 = vld [vmem:[%s278 + $0x20] sm:$0xff]
      %v290 = vld [vmem:[%s278 + $0x28] sm:$0xff]
      %v291 = vld [vmem:[%s278 + $0x30] sm:$0xff]
      %v292 = vld [vmem:[%s278 + $0x38] sm:$0xff]
      %v293 = vld [vmem:[%s278 + $0x40] sm:$0xff]
      %v294 = vld [vmem:[%s278 + $0x48] sm:$0xff]
      %v295 = vld [vmem:[%s278 + $0x50] sm:$0xff]
      %v296 = vld [vmem:[%s278 + $0x58] sm:$0xff]
      %v297 = vld [vmem:[%s278 + $0x60] sm:$0xff]
      %v298 = vld [vmem:[%s278 + $0x68] sm:$0xff]
      %v299 = vld [vmem:[%s278 + $0x70] sm:$0xff]
      %v300 = vld [vmem:[%s278 + $0x78] sm:$0xff]
      %v301 = vld [vmem:[%s1] sm:$0xf]
      %v302 = vld [vmem:[%s1 + $0x4] sm:$0xf]
      %v303 = vld [vmem:[%s1 + $0x8] sm:$0xf]
      %v304 = vld [vmem:[%s1 + $0xc] sm:$0xf]
      %v305 = vld [vmem:[%s1 + $0x10] sm:$0xf]
      %v306 = vld [vmem:[%s1 + $0x14] sm:$0xf]
      %v307 = vld [vmem:[%s1 + $0x18] sm:$0xf]
      %v308 = vld [vmem:[%s1 + $0x1c] sm:$0xf]
      %v309 = vld [vmem:[%s1 + $0x20] sm:$0xf]
      %v310 = vld [vmem:[%s1 + $0x24] sm:$0xf]
      %v311 = vld [vmem:[%s1 + $0x28] sm:$0xf]
      %v312 = vld [vmem:[%s1 + $0x2c] sm:$0xf]
      %v313 = vld [vmem:[%s1 + $0x30] sm:$0xf]
      %v314 = vld [vmem:[%s1 + $0x34] sm:$0xf]
      %v315 = vld [vmem:[%s1 + $0x38] sm:$0xf]
      %v316 = vld [vmem:[%s1 + $0x3c] sm:$0xf]
      %v333 = vunpack.c.l.b16 %v301
      %v334 = vunpack.c.l.b16 %v302
      %v335 = vunpack.c.l.b16 %v303
      %v336 = vunpack.c.l.b16 %v304
      %v337 = vunpack.c.l.b16 %v305
      %v338 = vunpack.c.l.b16 %v306
      %v339 = vunpack.c.l.b16 %v307
      %v340 = vunpack.c.l.b16 %v308
      %v341 = vunpack.c.l.b16 %v309
      %v342 = vunpack.c.l.b16 %v310
      %v343 = vunpack.c.l.b16 %v311
      %v344 = vunpack.c.l.b16 %v312
      %v345 = vunpack.c.l.b16 %v313
      %v346 = vunpack.c.l.b16 %v314
      %v347 = vunpack.c.l.b16 %v315
      %v348 = vunpack.c.l.b16 %v316
      %v349 = vpack.c.b16 %v334, %v333
      %v350 = vpack.c.b16 %v336, %v335
      %v351 = vpack.c.b16 %v338, %v337
      %v352 = vpack.c.b16 %v340, %v339
      %v353 = vpack.c.b16 %v342, %v341
      %v354 = vpack.c.b16 %v344, %v343
      %v355 = vpack.c.b16 %v346, %v345
      %v356 = vpack.c.b16 %v348, %v347
      %365 = vmatprep.subr.bf16.mxu0 0
      %366 = vmatpush1.bf16.msra.mxu0 %v349
      %367 = vmatprep.subr.bf16.mxu0 0
      %368 = vmatpush1.bf16.msra.mxu0 %v350
      %369 = vmatprep.subr.bf16.mxu0 0
      %370 = vmatpush1.bf16.msra.mxu0 %v351
      %371 = vmatprep.subr.bf16.mxu0 0
      %372 = vmatpush1.bf16.msra.mxu0 %v352
      %373 = vmatprep.subr.bf16.mxu0 0
      %374 = vmatpush1.bf16.msra.mxu0 %v353
      %375 = vmatprep.subr.bf16.mxu0 0
      %376 = vmatpush1.bf16.msra.mxu0 %v354
      %377 = vmatprep.subr.bf16.mxu0 0
      %378 = vmatpush1.bf16.msra.mxu0 %v355
      %379 = vmatprep.subr.bf16.mxu0 0
      %380 = vmatpush1.bf16.msra.mxu0 %v356
      %381 = vmatprep.subr.bf16.mxu0 0
      %382 = vmatpush1.bf16.msra.mxu0 0
      %383 = vmatprep.subr.bf16.mxu0 0
      %384 = vmatpush1.bf16.msra.mxu0 0
      %385 = vmatprep.subr.bf16.mxu0 0
      %386 = vmatpush1.bf16.msra.mxu0 0
      %387 = vmatprep.subr.bf16.mxu0 0
      %388 = vmatpush1.bf16.msra.mxu0 0
      %389 = vmatprep.subr.bf16.mxu0 0
      %390 = vmatpush1.bf16.msra.mxu0 0
      %391 = vmatprep.subr.bf16.mxu0 0
      %392 = vmatpush1.bf16.msra.mxu0 0
      %393 = vmatprep.subr.bf16.mxu0 0
      %394 = vmatpush1.bf16.msra.mxu0 0
      %395 = vmatprep.subr.bf16.mxu0 0
      %396 = vmatpush1.bf16.msra.mxu0 0
      %397 = vmatprep.mubr.bf16.mxu0 0
      %398 = vmatmul.mubr.bf16.gmra.mrb[0].mxu0 %v285
      %v399 = vpop.f32.mrb[0].mxu0
      %v400 = vadd.f32 0.0, %v399
      %v401 = vpop.f32.mrb[0].mxu0
      %v402 = vpop.f32.mrb[0].mxu0
      %v403 = vadd.f32 0.0, %v402
      %v404 = vpop.f32.mrb[0].mxu0
      %405 = vmatprep.mubr.bf16.mxu0 0
      %406 = vmatmul.mubr.bf16.gmra.mrb[0].mxu0 %v286
      %v407 = vpop.f32.mrb[0].mxu0
      %v408 = vadd.f32 0.0, %v407
      %v409 = vpop.f32.mrb[0].mxu0
      %v410 = vpop.f32.mrb[0].mxu0
      %v411 = vadd.f32 0.0, %v410
      %v412 = vpop.f32.mrb[0].mxu0
      %413 = vmatprep.mubr.bf16.mxu0 0
      %414 = vmatmul.mubr.bf16.gmra.mrb[0].mxu0 %v287
      %v415 = vpop.f32.mrb[0].mxu0
      %v416 = vadd.f32 0.0, %v415
      %v417 = vpop.f32.mrb[0].mxu0
      %v418 = vpop.f32.mrb[0].mxu0
      %v419 = vadd.f32 0.0, %v418
      %v420 = vpop.f32.mrb[0].mxu0
      %421 = vmatprep.mubr.bf16.mxu0 0
      %422 = vmatmul.mubr.bf16.gmra.mrb[0].mxu0 %v288
      %v423 = vpop.f32.mrb[0].mxu0
      %v424 = vadd.f32 0.0, %v423
      %v425 = vpop.f32.mrb[0].mxu0
      %v426 = vpop.f32.mrb[0].mxu0
      %v427 = vadd.f32 0.0, %v426
      %v428 = vpop.f32.mrb[0].mxu0
      %429 = vmatprep.mubr.bf16.mxu0 0
      %430 = vmatmul.mubr.bf16.gmra.mrb[0].mxu0 %v289
      %v431 = vpop.f32.mrb[0].mxu0
      %v432 = vadd.f32 0.0, %v431
      %v433 = vpop.f32.mrb[0].mxu0
      %v434 = vpop.f32.mrb[0].mxu0
      %v435 = vadd.f32 0.0, %v434
      %v436 = vpop.f32.mrb[0].mxu0
      %437 = vmatprep.mubr.bf16.mxu0 0
      %438 = vmatmul.mubr.bf16.gmra.mrb[0].mxu0 %v290
      %v439 = vpop.f32.mrb[0].mxu0
      %v440 = vadd.f32 0.0, %v439
      %v441 = vpop.f32.mrb[0].mxu0
      %v442 = vpop.f32.mrb[0].mxu0
      %v443 = vadd.f32 0.0, %v442
      %v444 = vpop.f32.mrb[0].mxu0
      %445 = vmatprep.mubr.bf16.mxu0 0
      %446 = vmatmul.mubr.bf16.gmra.mrb[0].mxu0 %v291
      %v447 = vpop.f32.mrb[0].mxu0
      %v448 = vadd.f32 0.0, %v447
      %v449 = vpop.f32.mrb[0].mxu0
      %v450 = vpop.f32.mrb[0].mxu0
      %v451 = vadd.f32 0.0, %v450
      %v452 = vpop.f32.mrb[0].mxu0
      %453 = vmatprep.mubr.bf16.mxu0 0
      %454 = vmatmul.mubr.bf16.gmra.mrb[0].mxu0 %v292
      %v455 = vpop.f32.mrb[0].mxu0
      %v456 = vadd.f32 0.0, %v455
      %v457 = vpop.f32.mrb[0].mxu0
      %v458 = vpop.f32.mrb[0].mxu0
      %v459 = vadd.f32 0.0, %v458
      %v460 = vpop.f32.mrb[0].mxu0
      %461 = vmatprep.mubr.bf16.mxu0 0
      %462 = vmatmul.mubr.bf16.gmra.mrb[0].mxu0 %v293
      %v463 = vpop.f32.mrb[0].mxu0
      %v464 = vadd.f32 0.0, %v463
      %v465 = vpop.f32.mrb[0].mxu0
      %v466 = vpop.f32.mrb[0].mxu0
      %v467 = vadd.f32 0.0, %v466
      %v468 = vpop.f32.mrb[0].mxu0
      %469 = vmatprep.mubr.bf16.mxu0 0
      %470 = vmatmul.mubr.bf16.gmra.mrb[0].mxu0 %v294
      %v471 = vpop.f32.mrb[0].mxu0
      %v472 = vadd.f32 0.0, %v471
      %v473 = vpop.f32.mrb[0].mxu0
      %v474 = vpop.f32.mrb[0].mxu0
      %v475 = vadd.f32 0.0, %v474
      %v476 = vpop.f32.mrb[0].mxu0
      %477 = vmatprep.mubr.bf16.mxu0 0
      %478 = vmatmul.mubr.bf16.gmra.mrb[0].mxu0 %v295
      %v479 = vpop.f32.mrb[0].mxu0
      %v480 = vadd.f32 0.0, %v479
      %v481 = vpop.f32.mrb[0].mxu0
      %v482 = vpop.f32.mrb[0].mxu0
      %v483 = vadd.f32 0.0, %v482
      %v484 = vpop.f32.mrb[0].mxu0
      %485 = vmatprep.mubr.bf16.mxu0 0
      %486 = vmatmul.mubr.bf16.gmra.mrb[0].mxu0 %v296
      %v487 = vpop.f32.mrb[0].mxu0
      %v488 = vadd.f32 0.0, %v487
      %v489 = vpop.f32.mrb[0].mxu0
      %v490 = vpop.f32.mrb[0].mxu0
      %v491 = vadd.f32 0.0, %v490
      %v492 = vpop.f32.mrb[0].mxu0
      %493 = vmatprep.mubr.bf16.mxu0 0
      %494 = vmatmul.mubr.bf16.gmra.mrb[0].mxu0 %v297
      %v495 = vpop.f32.mrb[0].mxu0
      %v496 = vadd.f32 0.0, %v495
      %v497 = vpop.f32.mrb[0].mxu0
      %v498 = vpop.f32.mrb[0].mxu0
      %v499 = vadd.f32 0.0, %v498
      %v500 = vpop.f32.mrb[0].mxu0
      %501 = vmatprep.mubr.bf16.mxu0 0
      %502 = vmatmul.mubr.bf16.gmra.mrb[0].mxu0 %v298
      %v503 = vpop.f32.mrb[0].mxu0
      %v504 = vadd.f32 0.0, %v503
      %v505 = vpop.f32.mrb[0].mxu0
      %v506 = vpop.f32.mrb[0].mxu0
      %v507 = vadd.f32 0.0, %v506
      %v508 = vpop.f32.mrb[0].mxu0
      %509 = vmatprep.mubr.bf16.mxu0 0
      %510 = vmatmul.mubr.bf16.gmra.mrb[0].mxu0 %v299
      %v511 = vpop.f32.mrb[0].mxu0
      %v512 = vadd.f32 0.0, %v511
      %v513 = vpop.f32.mrb[0].mxu0
      %v514 = vpop.f32.mrb[0].mxu0
      %v515 = vadd.f32 0.0, %v514
      %v516 = vpop.f32.mrb[0].mxu0
      %517 = vmatprep.mubr.bf16.mxu0 0
      %518 = vmatmul.mubr.bf16.gmra.mrb[0].mxu0 %v300
      %v519 = vpop.f32.mrb[0].mxu0
      %v520 = vadd.f32 0.0, %v519
      %v521 = vpop.f32.mrb[0].mxu0
      %v522 = vpop.f32.mrb[0].mxu0
      %v523 = vadd.f32 0.0, %v522
      %v524 = vpop.f32.mrb[0].mxu0
      %525 = vdwg.mxu0
      %v526 = vld [vmem:[%s2] sm:$0x1]
      %v528 = vlaneseq
      %v529 = vshrl.u32 %v528, 7
      %v530 = vsub.s32 0, %v529
      %v531 = vrot.slane %v526, %v530
      %v533 = vmul.f32 %v400, %v531
      %v534 = vmul.f32 %v403, %v531
      %v535 = vmul.f32 %v408, %v531
      %v536 = vmul.f32 %v411, %v531
      %v537 = vmul.f32 %v416, %v531
      %v538 = vmul.f32 %v419, %v531
      %v539 = vmul.f32 %v424, %v531
      %v540 = vmul.f32 %v427, %v531
      %v541 = vmul.f32 %v432, %v531
      %v542 = vmul.f32 %v435, %v531
      %v543 = vmul.f32 %v440, %v531
      %v544 = vmul.f32 %v443, %v531
      %v545 = vmul.f32 %v448, %v531
      %v546 = vmul.f32 %v451, %v531
      %v547 = vmul.f32 %v456, %v531
      %v548 = vmul.f32 %v459, %v531
      %v549 = vmul.f32 %v464, %v531
      %v550 = vmul.f32 %v467, %v531
      %v551 = vmul.f32 %v472, %v531
      %v552 = vmul.f32 %v475, %v531
      %v553 = vmul.f32 %v480, %v531
      %v554 = vmul.f32 %v483, %v531
      %v555 = vmul.f32 %v488, %v531
      %v556 = vmul.f32 %v491, %v531
      %v557 = vmul.f32 %v496, %v531
      %v558 = vmul.f32 %v499, %v531
      %v559 = vmul.f32 %v504, %v531
      %v560 = vmul.f32 %v507, %v531
      %v561 = vmul.f32 %v512, %v531
      %v562 = vmul.f32 %v515, %v531
      %v563 = vmul.f32 %v520, %v531
      %v564 = vmul.f32 %v523, %v531
      %v565 = vld [vmem:[%s3] sm:$0x1]
      %v567 = vlaneseq
      %v568 = vshrl.u32 %v567, 7
      %v569 = vsub.s32 0, %v568
      %v570 = vrot.slane %v565, %v569
      %v572 = vadd.f32 %v533, %v570
      %v573 = vadd.f32 %v534, %v570
      %v574 = vadd.f32 %v535, %v570
      %v575 = vadd.f32 %v536, %v570
      %v576 = vadd.f32 %v537, %v570
      %v577 = vadd.f32 %v538, %v570
      %v578 = vadd.f32 %v539, %v570
      %v579 = vadd.f32 %v540, %v570
      %v580 = vadd.f32 %v541, %v570
      %v581 = vadd.f32 %v542, %v570
      %v582 = vadd.f32 %v543, %v570
      %v583 = vadd.f32 %v544, %v570
      %v584 = vadd.f32 %v545, %v570
      %v585 = vadd.f32 %v546, %v570
      %v586 = vadd.f32 %v547, %v570
      %v587 = vadd.f32 %v548, %v570
      %v588 = vadd.f32 %v549, %v570
      %v589 = vadd.f32 %v550, %v570
      %v590 = vadd.f32 %v551, %v570
      %v591 = vadd.f32 %v552, %v570
      %v592 = vadd.f32 %v553, %v570
      %v593 = vadd.f32 %v554, %v570
      %v594 = vadd.f32 %v555, %v570
      %v595 = vadd.f32 %v556, %v570
      %v596 = vadd.f32 %v557, %v570
      %v597 = vadd.f32 %v558, %v570
      %v598 = vadd.f32 %v559, %v570
      %v599 = vadd.f32 %v560, %v570
      %v600 = vadd.f32 %v561, %v570
      %v601 = vadd.f32 %v562, %v570
      %v602 = vadd.f32 %v563, %v570
      %v603 = vadd.f32 %v564, %v570
      %vm604 = vcmp.gt.f32.partialorder %v572, 0.0
      %vm605 = vcmp.gt.f32.partialorder %v573, 0.0
      %vm606 = vcmp.gt.f32.partialorder %v574, 0.0
      %vm607 = vcmp.gt.f32.partialorder %v575, 0.0
      %vm608 = vcmp.gt.f32.partialorder %v576, 0.0
      %vm609 = vcmp.gt.f32.partialorder %v577, 0.0
      %vm610 = vcmp.gt.f32.partialorder %v578, 0.0
      %vm611 = vcmp.gt.f32.partialorder %v579, 0.0
      %vm612 = vcmp.gt.f32.partialorder %v580, 0.0
      %vm613 = vcmp.gt.f32.partialorder %v581, 0.0
      %vm614 = vcmp.gt.f32.partialorder %v582, 0.0
      %vm615 = vcmp.gt.f32.partialorder %v583, 0.0
      %vm616 = vcmp.gt.f32.partialorder %v584, 0.0
      %vm617 = vcmp.gt.f32.partialorder %v585, 0.0
      %vm618 = vcmp.gt.f32.partialorder %v586, 0.0
      %vm619 = vcmp.gt.f32.partialorder %v587, 0.0
      %vm620 = vcmp.gt.f32.partialorder %v588, 0.0
      %vm621 = vcmp.gt.f32.partialorder %v589, 0.0
      %vm622 = vcmp.gt.f32.partialorder %v590, 0.0
      %vm623 = vcmp.gt.f32.partialorder %v591, 0.0
      %vm624 = vcmp.gt.f32.partialorder %v592, 0.0
      %vm625 = vcmp.gt.f32.partialorder %v593, 0.0
      %vm626 = vcmp.gt.f32.partialorder %v594, 0.0
      %vm627 = vcmp.gt.f32.partialorder %v595, 0.0
      %vm628 = vcmp.gt.f32.partialorder %v596, 0.0
      %vm629 = vcmp.gt.f32.partialorder %v597, 0.0
      %vm630 = vcmp.gt.f32.partialorder %v598, 0.0
      %vm631 = vcmp.gt.f32.partialorder %v599, 0.0
      %vm632 = vcmp.gt.f32.partialorder %v600, 0.0
      %vm633 = vcmp.gt.f32.partialorder %v601, 0.0
      %vm634 = vcmp.gt.f32.partialorder %v602, 0.0
      %vm635 = vcmp.gt.f32.partialorder %v603, 0.0
      %v636 = vmul.f32 %v572, 0.1
      %v637 = vmul.f32 %v573, 0.1
      %v638 = vmul.f32 %v574, 0.1
      %v639 = vmul.f32 %v575, 0.1
      %v640 = vmul.f32 %v576, 0.1
      %v641 = vmul.f32 %v577, 0.1
      %v642 = vmul.f32 %v578, 0.1
      %v643 = vmul.f32 %v579, 0.1
      %v644 = vmul.f32 %v580, 0.1
      %v645 = vmul.f32 %v581, 0.1
      %v646 = vmul.f32 %v582, 0.1
      %v647 = vmul.f32 %v583, 0.1
      %v648 = vmul.f32 %v584, 0.1
      %v649 = vmul.f32 %v585, 0.1
      %v650 = vmul.f32 %v586, 0.1
      %v651 = vmul.f32 %v587, 0.1
      %v652 = vmul.f32 %v588, 0.1
      %v653 = vmul.f32 %v589, 0.1
      %v654 = vmul.f32 %v590, 0.1
      %v655 = vmul.f32 %v591, 0.1
      %v656 = vmul.f32 %v592, 0.1
      %v657 = vmul.f32 %v593, 0.1
      %v658 = vmul.f32 %v594, 0.1
      %v659 = vmul.f32 %v595, 0.1
      %v660 = vmul.f32 %v596, 0.1
      %v661 = vmul.f32 %v597, 0.1
      %v662 = vmul.f32 %v598, 0.1
      %v663 = vmul.f32 %v599, 0.1
      %v664 = vmul.f32 %v600, 0.1
      %v665 = vmul.f32 %v601, 0.1
      %v666 = vmul.f32 %v602, 0.1
      %v667 = vmul.f32 %v603, 0.1
      %v668 = vsel %vm604, %v572, %v636
      %v669 = vsel %vm605, %v573, %v637
      %v670 = vsel %vm606, %v574, %v638
      %v671 = vsel %vm607, %v575, %v639
      %v672 = vsel %vm608, %v576, %v640
      %v673 = vsel %vm609, %v577, %v641
      %v674 = vsel %vm610, %v578, %v642
      %v675 = vsel %vm611, %v579, %v643
      %v676 = vsel %vm612, %v580, %v644
      %v677 = vsel %vm613, %v581, %v645
      %v678 = vsel %vm614, %v582, %v646
      %v679 = vsel %vm615, %v583, %v647
      %v680 = vsel %vm616, %v584, %v648
      %v681 = vsel %vm617, %v585, %v649
      %v682 = vsel %vm618, %v586, %v650
      %v683 = vsel %vm619, %v587, %v651
      %v684 = vsel %vm620, %v588, %v652
      %v685 = vsel %vm621, %v589, %v653
      %v686 = vsel %vm622, %v590, %v654
      %v687 = vsel %vm623, %v591, %v655
      %v688 = vsel %vm624, %v592, %v656
      %v689 = vsel %vm625, %v593, %v657
      %v690 = vsel %vm626, %v594, %v658
      %v691 = vsel %vm627, %v595, %v659
      %v692 = vsel %vm628, %v596, %v660
      %v693 = vsel %vm629, %v597, %v661
      %v694 = vsel %vm630, %v598, %v662
      %v695 = vsel %vm631, %v599, %v663
      %v696 = vsel %vm632, %v600, %v664
      %v697 = vsel %vm633, %v601, %v665
      %v698 = vsel %vm634, %v602, %v666
      %v699 = vsel %vm635, %v603, %v667
      %v700 = vpack.c.bf16 %v669, %v668
      %v701 = vpack.c.bf16 %v671, %v670
      %v702 = vpack.c.bf16 %v673, %v672
      %v703 = vpack.c.bf16 %v675, %v674
      %v704 = vpack.c.bf16 %v677, %v676
      %v705 = vpack.c.bf16 %v679, %v678
      %v706 = vpack.c.bf16 %v681, %v680
      %v707 = vpack.c.bf16 %v683, %v682
      %v708 = vpack.c.bf16 %v685, %v684
      %v709 = vpack.c.bf16 %v687, %v686
      %v710 = vpack.c.bf16 %v689, %v688
      %v711 = vpack.c.bf16 %v691, %v690
      %v712 = vpack.c.bf16 %v693, %v692
      %v713 = vpack.c.bf16 %v695, %v694
      %v714 = vpack.c.bf16 %v697, %v696
      %v715 = vpack.c.bf16 %v699, %v698
      %v732 = vunpack.c.l.b16 %v700
      %v733 = vunpack.c.h.b16 %v700
      %v734 = vunpack.c.l.b16 %v701
      %v735 = vunpack.c.h.b16 %v701
      %v736 = vunpack.c.l.b16 %v702
      %v737 = vunpack.c.h.b16 %v702
      %v738 = vunpack.c.l.b16 %v703
      %v739 = vunpack.c.h.b16 %v703
      %v740 = vunpack.c.l.b16 %v704
      %v741 = vunpack.c.h.b16 %v704
      %v742 = vunpack.c.l.b16 %v705
      %v743 = vunpack.c.h.b16 %v705
      %v744 = vunpack.c.l.b16 %v706
      %v745 = vunpack.c.h.b16 %v706
      %v746 = vunpack.c.l.b16 %v707
      %v747 = vunpack.c.h.b16 %v707
      %v748 = vunpack.c.l.b16 %v708
      %v749 = vunpack.c.h.b16 %v708
      %v750 = vunpack.c.l.b16 %v709
      %v751 = vunpack.c.h.b16 %v709
      %v752 = vunpack.c.l.b16 %v710
      %v753 = vunpack.c.h.b16 %v710
      %v754 = vunpack.c.l.b16 %v711
      %v755 = vunpack.c.h.b16 %v711
      %v756 = vunpack.c.l.b16 %v712
      %v757 = vunpack.c.h.b16 %v712
      %v758 = vunpack.c.l.b16 %v713
      %v759 = vunpack.c.h.b16 %v713
      %v760 = vunpack.c.l.b16 %v714
      %v761 = vunpack.c.h.b16 %v714
      %v762 = vunpack.c.l.b16 %v715
      %v763 = vunpack.c.h.b16 %v715
      %v764 = vpack.c.b16 %v732, %v732
      %v765 = vpack.c.b16 %v733, %v733
      %v766 = vpack.c.b16 %v734, %v734
      %v767 = vpack.c.b16 %v735, %v735
      %v768 = vpack.c.b16 %v736, %v736
      %v769 = vpack.c.b16 %v737, %v737
      %v770 = vpack.c.b16 %v738, %v738
      %v771 = vpack.c.b16 %v739, %v739
      %v772 = vpack.c.b16 %v740, %v740
      %v773 = vpack.c.b16 %v741, %v741
      %v774 = vpack.c.b16 %v742, %v742
      %v775 = vpack.c.b16 %v743, %v743
      %v776 = vpack.c.b16 %v744, %v744
      %v777 = vpack.c.b16 %v745, %v745
      %v778 = vpack.c.b16 %v746, %v746
      %v779 = vpack.c.b16 %v747, %v747
      %v780 = vpack.c.b16 %v748, %v748
      %v781 = vpack.c.b16 %v749, %v749
      %v782 = vpack.c.b16 %v750, %v750
      %v783 = vpack.c.b16 %v751, %v751
      %v784 = vpack.c.b16 %v752, %v752
      %v785 = vpack.c.b16 %v753, %v753
      %v786 = vpack.c.b16 %v754, %v754
      %v787 = vpack.c.b16 %v755, %v755
      %v788 = vpack.c.b16 %v756, %v756
      %v789 = vpack.c.b16 %v757, %v757
      %v790 = vpack.c.b16 %v758, %v758
      %v791 = vpack.c.b16 %v759, %v759
      %v792 = vpack.c.b16 %v760, %v760
      %v793 = vpack.c.b16 %v761, %v761
      %v794 = vpack.c.b16 %v762, %v762
      %v795 = vpack.c.b16 %v763, %v763
      %828 = vst [vmem:[%s175] sm:$0xf] %v764
      %829 = vst [vmem:[%s175 + $0x4] sm:$0xf] %v765
      %830 = vst [vmem:[%s175 + $0x8] sm:$0xf] %v766
      %831 = vst [vmem:[%s175 + $0xc] sm:$0xf] %v767
      %832 = vst [vmem:[%s175 + $0x10] sm:$0xf] %v768
      %833 = vst [vmem:[%s175 + $0x14] sm:$0xf] %v769
      %834 = vst [vmem:[%s175 + $0x18] sm:$0xf] %v770
      %835 = vst [vmem:[%s175 + $0x1c] sm:$0xf] %v771
      %836 = vst [vmem:[%s175 + $0x20] sm:$0xf] %v772
      %837 = vst [vmem:[%s175 + $0x24] sm:$0xf] %v773
      %838 = vst [vmem:[%s175 + $0x28] sm:$0xf] %v774
      %839 = vst [vmem:[%s175 + $0x2c] sm:$0xf] %v775
      %840 = vst [vmem:[%s175 + $0x30] sm:$0xf] %v776
      %841 = vst [vmem:[%s175 + $0x34] sm:$0xf] %v777
      %842 = vst [vmem:[%s175 + $0x38] sm:$0xf] %v778
      %843 = vst [vmem:[%s175 + $0x3c] sm:$0xf] %v779
      %844 = vst [vmem:[%s175 + $0x40] sm:$0xf] %v780
      %845 = vst [vmem:[%s175 + $0x44] sm:$0xf] %v781
      %846 = vst [vmem:[%s175 + $0x48] sm:$0xf] %v782
      %847 = vst [vmem:[%s175 + $0x4c] sm:$0xf] %v783
      %848 = vst [vmem:[%s175 + $0x50] sm:$0xf] %v784
      %849 = vst [vmem:[%s175 + $0x54] sm:$0xf] %v785
      %850 = vst [vmem:[%s175 + $0x58] sm:$0xf] %v786
      %851 = vst [vmem:[%s175 + $0x5c] sm:$0xf] %v787
      %852 = vst [vmem:[%s175 + $0x60] sm:$0xf] %v788
      %853 = vst [vmem:[%s175 + $0x64] sm:$0xf] %v789
      %854 = vst [vmem:[%s175 + $0x68] sm:$0xf] %v790
      %855 = vst [vmem:[%s175 + $0x6c] sm:$0xf] %v791
      %856 = vst [vmem:[%s175 + $0x70] sm:$0xf] %v792
      %857 = vst [vmem:[%s175 + $0x74] sm:$0xf] %v793
      %858 = vst [vmem:[%s175 + $0x78] sm:$0xf] %v794
      %859 = vst [vmem:[%s175 + $0x7c] sm:$0xf] %v795
      %s860 = smul.u32 16, %s20
      %p861 = scmp.lt.s32.totalorder %s19, 1
      %s862 = scalar_select %p861, %s19, 1
      %p863 = scmp.lt.s32.totalorder %s860, 15
      %s864 = scalar_select %p863, %s860, 15
      %s865 = smul.addr %s864, 2
      %s866 = smul.addr %s862, 32
      %s867 = sadd.s32 %s865, %s866
      %s868 = smul.addr %s867, 4
      %s869 = scalar_lea.vmem %s4, %s868
      // Predicated region
      $region71: #{conv_forward.1} parent=31 // pred_check
        %p870 = pneg %p110
      $region72: #{conv_forward.1} parent=31 // pred_check_branch
        %872 = sbr.rel (%p870) target = $region74
      $region73: #{conv_forward.1} parent=31 // pred_region
        %s873 = smul.u32 16, %s20
      $region74: #{conv_forward.1} parent=31 // pred_fallthru
        _
    $region32: #{conv_forward.1} parent=5 // pred_fallthru
      _
    %p874 = scmp.le.s32.totalorder 2, %s10
    // Predicated region
    $region75: #{conv_forward.1} parent=5 // pred_check
      %p875 = pneg %p874
    $region76: #{conv_forward.1} parent=5 // pred_check_branch
      %877 = sbr.rel (%p875) target = $region78
    $region77: #{conv_forward.1} parent=5 // pred_region
      %s878 = ssub.s32 %s10, 2
      // Predicated region
      $region79: #{conv_forward.1} parent=77 // pred_check
        %p879 = pneg %p116
      $region80: #{conv_forward.1} parent=77 // pred_check_branch
        %881 = sbr.rel (%p879) target = $region82
      $region81: #{conv_forward.1} parent=77 // pred_region
        %s882 = smul.u32 16, %s22
        %p883 = scmp.lt.s32.totalorder %s21, 1
        %s884 = scalar_select %p883, %s21, 1
        %p885 = scmp.lt.s32.totalorder %s882, 15
        %s886 = scalar_select %p885, %s882, 15
        %s887 = smul.addr %s886, 2
        %s888 = smul.addr %s884, 32
        %s889 = sadd.s32 %s887, %s888
        %s890 = smul.addr %s889, 4
        %s891 = scalar_lea.vmem %s4, %s890
      $region82: #{conv_forward.1} parent=77 // pred_fallthru
        _
    $region78: #{conv_forward.1} parent=5 // pred_fallthru
      _
  $region6: #{conv_forward.1} parent=0 // loop_footer
    %s14 = sadd.s32 1, %s10
  $region7: #{conv_forward.1} parent=0 // loop_footer_branch
    %9 = sbr.rel target = $region3
  $region8: #{conv_forward.1} parent=0 // loop_exit
    _
  %892 = vsyncmov [#allocation3]
  %s893 = vpop.sfrf %892
  %p894 = scmp.eq.s32.totalorder %s893, 0
  %p895 = pneg %p894
  %897 = shalt.err (%p895)
  %s898 = scalar_lea.sflag [#allocation3], 1
  %899 = vsyncmov %s898
  %s900 = vpop.sfrf %899
  %p901 = scmp.eq.s32.totalorder %s900, 0
  %p902 = pneg %p901
  %904 = shalt.err (%p902)

</llo_original>
